<compile_context>
chip_gen: v6e
topology: v6e:2x2x1
jax: 0.10.0
libtpu: 0.0.40
codegen_flags: <defaults>
</compile_context>

<pallas_src>
import functools

import jax
import jax.numpy as jnp
from jax import lax
from jax.experimental import pallas as pl
from jax.experimental.pallas import tpu as pltpu


def _channel_attention_kernel(x_ref, w1_ref, b1_ref, w2_ref, b2_ref, out_ref,
                              *, inv_hw, hw_rem):
    # x_ref:  (b_tile, C, hw_chunk)  native dtype (f32/bf16)
    # w1_ref: (C, Cr)   b1_ref: (1, Cr)   w2_ref: (Cr, C)   b2_ref: (1, C)  f32
    # out_ref:(b_tile, C, 1) f32 -- resident across the reduction axis and used
    #         directly as the accumulator (no scratch buffer).
    k = pl.program_id(1)
    nk = pl.num_programs(1)

    @pl.when(k == 0)
    def _():
        out_ref[...] = jnp.zeros_like(out_ref)

    # Partial spatial sum over the lane axis: VPU adds across lane-dim vregs
    # plus one cross-lane (XLU) reduce -- hidden under the HBM-bound DMA.
    # TODO(synk): on v7x with bf16 inputs a ones-vector MXU contraction would
    # avoid the f32 upcast on the VPU; kept on the VPU here for robustness.
    chunk = x_ref[...].astype(jnp.float32)                 # (b_tile, C, hw_chunk)
    if hw_rem:
        # Ragged tail: Pallas does not zero the out-of-bounds region of edge
        # blocks, so the last chunk must be masked explicitly.
        hw_chunk = chunk.shape[-1]
        col = lax.broadcasted_iota(jnp.int32, (1, 1, hw_chunk), 2)
        limit = jnp.where(k == nk - 1, hw_rem, hw_chunk)
        chunk = jnp.where(col < limit, chunk, 0.0)
    out_ref[...] += jnp.sum(chunk, axis=-1, keepdims=True)

    @pl.when(k == nk - 1)
    def _():
        # AdaptiveAvgPool2d(1): scale by 1/(H*W) once, after accumulation.
        gap = out_ref[...][..., 0] * inv_hw                                   # (b_tile, C)
        # 1x1 conv (C -> C//r) + bias + ReLU
        h = jnp.dot(gap, w1_ref[...], preferred_element_type=jnp.float32) + b1_ref[...]
        h = jnp.maximum(h, 0.0)
        # 1x1 conv (C//r -> C) + bias
        out = jnp.dot(h, w2_ref[...], preferred_element_type=jnp.float32) + b2_ref[...]
        out_ref[...] = out[..., None].astype(out_ref.dtype)


def channel_attention(x, w1, b1, w2, b2, *, max_tile_bytes=None):
    """x: (B, C, H, W). w1: (Cr, C, 1, 1), b1: (Cr,), w2: (C, Cr, 1, 1), b2: (C,).

    Returns cattn of shape (B, C, 1, 1) in x.dtype, matching the PyTorch module.
    """
    B, C, H, W = x.shape
    Cr = w1.shape[0]
    HW = H * W

    # Channels-on-sublanes / spatial-on-lanes layout: a FREE reshape of NCHW.
    x_r = x.reshape(B, C, HW)

    # ---- batch tiling: >= 2 blocks on the "parallel" axis whenever B >= 2 so
    # both v7x TensorCores get work; b_tile divides B (no ragged batch blocks).
    b_tile = 1
    for cand in (64, 32, 16, 8, 4, 2, 1):
        if cand <= B and B % cand == 0 and (B // cand) >= min(2, B):
            b_tile = cand
            break
    num_b_tiles = B // b_tile

    # ---- generation-aware VMEM budget & streaming tile size.
    try:
        vmem_cap = int(getattr(pltpu.get_tpu_info(), "vmem_capacity_bytes",
                               128 * 1024 * 1024))
    except Exception:  # conservative fallback if the query is unavailable
        vmem_cap = 128 * 1024 * 1024
    # <= ~48 MiB on v7x (64 MiB/TC), <= 64 MiB on v5e/v6e (128 MiB/TC).
    vmem_limit = int(min((vmem_cap * 3) // 4, 64 * 1024 * 1024))
    if max_tile_bytes is None:
        # 2 double-buffered native-dtype tiles + 1 tile-sized f32 temporary
        # (+ headroom) must fit under vmem_limit.
        max_tile_bytes = min(16 * 1024 * 1024, vmem_limit // 5)

    itemsize = jnp.dtype(x.dtype).itemsize
    col_bytes = max(1, b_tile * C * itemsize)       # bytes per spatial column of a tile
    max_cols = max(128, (max_tile_bytes // col_bytes // 128) * 128)

    if HW <= max_cols:
        hw_chunk = HW                               # single chunk; full-dim block is legal
    else:
        # Prefer a lane-aligned (multiple-of-128) chunk that divides HW so no
        # tail masking is needed; otherwise take the largest aligned chunk.
        hw_chunk = max_cols
        for cand in range(max_cols, max_cols // 2, -128):
            if HW % cand == 0:
                hw_chunk = cand
                break
    num_hw_chunks = pl.cdiv(HW, hw_chunk)
    hw_rem = HW % hw_chunk

    # 1x1 conv weights as dense (in, out) matrices; biases as (1, n) rows.
    w1_t = w1.reshape(Cr, C).T.astype(jnp.float32)     # (C, Cr)
    w2_t = w2.reshape(C, Cr).T.astype(jnp.float32)     # (Cr, C)
    b1_r = b1.reshape(1, Cr).astype(jnp.float32)
    b2_r = b2.reshape(1, C).astype(jnp.float32)

    kernel = functools.partial(_channel_attention_kernel,
                               inv_hw=1.0 / float(HW), hw_rem=int(hw_rem))

    out = pl.pallas_call(
        kernel,
        out_shape=jax.ShapeDtypeStruct((B, C, 1), jnp.float32),
        grid_spec=pltpu.PrefetchScalarGridSpec(
            num_scalar_prefetch=0,
            grid=(num_b_tiles, num_hw_chunks),
            in_specs=[
                pl.BlockSpec((b_tile, C, hw_chunk), lambda b, k: (b, 0, k)),
                pl.BlockSpec((C, Cr), lambda b, k: (0, 0)),
                pl.BlockSpec((1, Cr), lambda b, k: (0, 0)),
                pl.BlockSpec((Cr, C), lambda b, k: (0, 0)),
                pl.BlockSpec((1, C), lambda b, k: (0, 0)),
            ],
            out_specs=pl.BlockSpec((b_tile, C, 1), lambda b, k: (b, 0, 0)),
        ),
        compiler_params=pltpu.CompilerParams(
            dimension_semantics=("parallel", "arbitrary"),
            vmem_limit_bytes=vmem_limit,
        ),
    )(x_r, w1_t, b1_r, w2_t, b2_r)

    # Tiny (B, C) epilogue reshape + cast for dtype parity with the PyTorch module.
    return out.reshape(B, C, 1, 1).astype(x.dtype)


if __name__ == "__main__":
    # Small deterministic example: dim=16, reduction=8 -> hidden=2.
    # H*W = 144 is deliberately not a multiple of 128 so that, with the small
    # tile budget below, both the multi-chunk reduction and the ragged-tail
    # masking paths are exercised.
    B, C, H, W = 2, 16, 12, 12
    reduction = 8
    Cr = C // reduction

    key = jax.random.PRNGKey(0)
    kx, kw1, kb1, kw2, kb2 = jax.random.split(key, 5)

    x = jax.random.normal(kx, (B, C, H, W), dtype=jnp.float32)
    # Conv2d(dim, dim//r, 1) weights: (out, in, 1, 1) + bias (out,)
    w1 = jax.random.normal(kw1, (Cr, C, 1, 1), dtype=jnp.float32) * 0.1
    b1 = jax.random.normal(kb1, (Cr,), dtype=jnp.float32) * 0.1
    w2 = jax.random.normal(kw2, (C, Cr, 1, 1), dtype=jnp.float32) * 0.1
    b2 = jax.random.normal(kb2, (C,), dtype=jnp.float32) * 0.1

    # Pure-JAX reference.
    gap = jnp.mean(x, axis=(2, 3))                              # (B, C)
    h = jnp.maximum(gap @ w1.reshape(Cr, C).T + b1, 0.0)        # (B, Cr)
    ref = (h @ w2.reshape(C, Cr).T + b2).reshape(B, C, 1, 1)    # (B, C, 1, 1)

    # 1) Tiny tile budget -> multi-chunk reduction + masked ragged tail.
    cattn_small = channel_attention(x, w1, b1, w2, b2, max_tile_bytes=4096)
    jax.block_until_ready(cattn_small)
    assert cattn_small.shape == (B, C, 1, 1)
    assert jnp.allclose(cattn_small, ref, atol=1e-5, rtol=1e-5)

    # 2) Default (auto, generation-aware) tile budget -> single-chunk path.
    cattn = channel_attention(x, w1, b1, w2, b2)
    jax.block_until_ready(cattn)
    assert cattn.shape == (B, C, 1, 1)
    assert jnp.allclose(cattn, ref, atol=1e-5, rtol=1e-5)

    print("KERNEL_OK")
</pallas_src>

<mosaic_0001>
module attributes {stable_mosaic.version = 11 : i64} {
  func.func @_channel_attention_kernel(%arg0: i32, %arg1: i32, %arg2: memref<1x16x128xf32, #tpu.memory_space<vmem>>, %arg3: memref<16x2xf32, #tpu.memory_space<vmem>>, %arg4: memref<1x2xf32, #tpu.memory_space<vmem>>, %arg5: memref<2x16xf32, #tpu.memory_space<vmem>>, %arg6: memref<1x16xf32, #tpu.memory_space<vmem>>, %arg7: memref<1x16x1xf32, #tpu.memory_space<vmem>>) attributes {dimension_semantics = [#tpu.dimension_semantics<parallel>, #tpu.dimension_semantics<arbitrary>], iteration_bounds = array<i64: 2, 2>, scalar_prefetch = 0 : i64, scratch_operands = 0 : i64, tpu.core_type = #tpu.core_type<tc>, window_params = [{transform_indices = @transform_0, window_bounds = array<i64: 1, 16, 128>}, {pipeline_mode = #tpu.pipeline_mode<synchronous>, transform_indices = @transform_1, window_bounds = array<i64: 16, 2>}, {pipeline_mode = #tpu.pipeline_mode<synchronous>, transform_indices = @transform_2, window_bounds = array<i64: 1, 2>}, {pipeline_mode = #tpu.pipeline_mode<synchronous>, transform_indices = @transform_3, window_bounds = array<i64: 2, 16>}, {pipeline_mode = #tpu.pipeline_mode<synchronous>, transform_indices = @transform_4, window_bounds = array<i64: 1, 16>}, {transform_indices = @transform_5, window_bounds = array<i64: 1, 16, 1>}]} {
    %c0_i32 = arith.constant 0 : i32
    %0 = arith.cmpi eq, %arg1, %c0_i32 : i32
    %1 = arith.extui %0 : i1 to i32
    %c0_i32_0 = arith.constant 0 : i32
    %2 = arith.cmpi ne, %1, %c0_i32_0 : i32
    scf.if %2 {
      %cst_12 = arith.constant 0.000000e+00 : f32
      %21 = vector.broadcast %cst_12 : f32 to vector<1x16x1xf32>
      %c0_13 = arith.constant 0 : index
      %c0_14 = arith.constant 0 : index
      %c0_15 = arith.constant 0 : index
      %22 = vector.load %arg7[%c0_13, %c0_14, %c0_15] : memref<1x16x1xf32, #tpu.memory_space<vmem>>, vector<1x16x1xf32>
      tpu.vector_store %arg7[%c0_13, %c0_14, %c0_15], %21 {strides = array<i32>} : memref<1x16x1xf32, #tpu.memory_space<vmem>>, vector<1x16x1xf32>,
    } else {
    }
    %c0 = arith.constant 0 : index
    %c0_1 = arith.constant 0 : index
    %c0_2 = arith.constant 0 : index
    %3 = vector.load %arg2[%c0, %c0_1, %c0_2] : memref<1x16x128xf32, #tpu.memory_space<vmem>>, vector<1x16x128xf32>
    %4 = tpu.iota {dimensions = array<i32: 2>} : vector<1x1x128xi32>
    %c1_i32 = arith.constant 1 : i32
    %5 = arith.cmpi eq, %arg1, %c1_i32 : i32
    %c16_i32 = arith.constant 16 : i32
    %c128_i32 = arith.constant 128 : i32
    %6 = arith.select %5, %c16_i32, %c128_i32 : i32
    %7 = vector.broadcast %6 : i32 to vector<1x1x128xi32>
    %8 = arith.cmpi slt, %4, %7 : vector<1x1x128xi32>
    %cst = arith.constant 0.000000e+00 : f32
    %9 = vector.shape_cast %8 : vector<1x1x128xi1> to vector<1x1x128xi1>
    %10 = vector.broadcast %9 : vector<1x1x128xi1> to vector<1x16x128xi1>
    %11 = vector.broadcast %cst : f32 to vector<1x16x128xf32>
    %12 = arith.select %10, %3, %11 : vector<1x16x128xi1>, vector<1x16x128xf32>
    %c0_3 = arith.constant 0 : index
    %c0_4 = arith.constant 0 : index
    %c0_5 = arith.constant 0 : index
    %13 = vector.load %arg7[%c0_3, %c0_4, %c0_5] : memref<1x16x1xf32, #tpu.memory_space<vmem>>, vector<1x16x1xf32>
    %cst_6 = arith.constant dense<0.000000e+00> : vector<1x16xf32>
    %14 = vector.multi_reduction <add>, %12, %cst_6 [2] : vector<1x16x128xf32> to vector<1x16xf32>
    %15 = vector.shape_cast %14 : vector<1x16xf32> to vector<1x16x1xf32>
    %16 = arith.addf %13, %15 : vector<1x16x1xf32>
    %c0_7 = arith.constant 0 : index
    %c0_8 = arith.constant 0 : index
    %c0_9 = arith.constant 0 : index
    %17 = vector.load %arg7[%c0_7, %c0_8, %c0_9] : memref<1x16x1xf32, #tpu.memory_space<vmem>>, vector<1x16x1xf32>
    tpu.vector_store %arg7[%c0_7, %c0_8, %c0_9], %16 {strides = array<i32>} : memref<1x16x1xf32, #tpu.memory_space<vmem>>, vector<1x16x1xf32>,
    %c1_i32_10 = arith.constant 1 : i32
    %18 = arith.cmpi eq, %arg1, %c1_i32_10 : i32
    %19 = arith.extui %18 : i1 to i32
    %c0_i32_11 = arith.constant 0 : i32
    %20 = arith.cmpi ne, %19, %c0_i32_11 : i32
    scf.if %20 {
      %c0_12 = arith.constant 0 : index
      %c0_13 = arith.constant 0 : index
      %c0_14 = arith.constant 0 : index
      %21 = vector.load %arg7[%c0_12, %c0_13, %c0_14] : memref<1x16x1xf32, #tpu.memory_space<vmem>>, vector<1x16x1xf32>
      %22 = vector.shape_cast %21 : vector<1x16x1xf32> to vector<1x16xf32>
      %cst_15 = arith.constant 0.0069444445 : f32
      %23 = vector.broadcast %cst_15 : f32 to vector<1x16xf32>
      %24 = arith.mulf %22, %23 : vector<1x16xf32>
      %c0_16 = arith.constant 0 : index
      %c0_17 = arith.constant 0 : index
      %25 = vector.load %arg3[%c0_16, %c0_17] : memref<16x2xf32, #tpu.memory_space<vmem>>, vector<16x2xf32>
      %cst_18 = arith.constant dense<0.000000e+00> : vector<1x2xf32>
      %26 = tpu.matmul %24, %25, %cst_18 {dimension_numbers = #tpu.dot_dimension_numbers<[1], [0], [0], [1], [0, 0, 1, 1], [], []>} : vector<1x16xf32>, vector<16x2xf32>, vector<1x2xf32> -> vector<1x2xf32>
      %c0_19 = arith.constant 0 : index
      %c0_20 = arith.constant 0 : index
      %27 = vector.load %arg4[%c0_19, %c0_20] : memref<1x2xf32, #tpu.memory_space<vmem>>, vector<1x2xf32>
      %28 = arith.addf %26, %27 : vector<1x2xf32>
      %cst_21 = arith.constant 0.000000e+00 : f32
      %29 = vector.broadcast %cst_21 : f32 to vector<1x2xf32>
      %30 = arith.maximumf %28, %29 : vector<1x2xf32>
      %c0_22 = arith.constant 0 : index
      %c0_23 = arith.constant 0 : index
      %31 = vector.load %arg5[%c0_22, %c0_23] : memref<2x16xf32, #tpu.memory_space<vmem>>, vector<2x16xf32>
      %cst_24 = arith.constant dense<0.000000e+00> : vector<1x16xf32>
      %32 = tpu.matmul %30, %31, %cst_24 {dimension_numbers = #tpu.dot_dimension_numbers<[1], [0], [0], [1], [0, 0, 1, 1], [], []>} : vector<1x2xf32>, vector<2x16xf32>, vector<1x16xf32> -> vector<1x16xf32>
      %c0_25 = arith.constant 0 : index
      %c0_26 = arith.constant 0 : index
      %33 = vector.load %arg6[%c0_25, %c0_26] : memref<1x16xf32, #tpu.memory_space<vmem>>, vector<1x16xf32>
      %34 = arith.addf %32, %33 : vector<1x16xf32>
      %35 = vector.shape_cast %34 : vector<1x16xf32> to vector<1x16x1xf32>
      %c0_27 = arith.constant 0 : index
      %c0_28 = arith.constant 0 : index
      %c0_29 = arith.constant 0 : index
      %36 = vector.load %arg7[%c0_27, %c0_28, %c0_29] : memref<1x16x1xf32, #tpu.memory_space<vmem>>, vector<1x16x1xf32>
      tpu.vector_store %arg7[%c0_27, %c0_28, %c0_29], %35 {strides = array<i32>} : memref<1x16x1xf32, #tpu.memory_space<vmem>>, vector<1x16x1xf32>,
    } else {
    }
    return
  }
  func.func @transform_0(%arg0: i32, %arg1: i32) -> (i32, i32, i32) {
    %c0_i32 = arith.constant 0 : i32
    %c0_i32_0 = arith.constant 0 : i32
    return %arg0, %c0_i32, %arg1 : i32, i32, i32
  }
  func.func @transform_1(%arg0: i32, %arg1: i32) -> (i32, i32) {
    %c0_i32 = arith.constant 0 : i32
    %c0_i32_0 = arith.constant 0 : i32
    %c0_i32_1 = arith.constant 0 : i32
    return %c0_i32, %c0_i32_0 : i32, i32
  }
  func.func @transform_2(%arg0: i32, %arg1: i32) -> (i32, i32) {
    %c0_i32 = arith.constant 0 : i32
    %c0_i32_0 = arith.constant 0 : i32
    %c0_i32_1 = arith.constant 0 : i32
    return %c0_i32, %c0_i32_0 : i32, i32
  }
  func.func @transform_3(%arg0: i32, %arg1: i32) -> (i32, i32) {
    %c0_i32 = arith.constant 0 : i32
    %c0_i32_0 = arith.constant 0 : i32
    %c0_i32_1 = arith.constant 0 : i32
    return %c0_i32, %c0_i32_0 : i32, i32
  }
  func.func @transform_4(%arg0: i32, %arg1: i32) -> (i32, i32) {
    %c0_i32 = arith.constant 0 : i32
    %c0_i32_0 = arith.constant 0 : i32
    %c0_i32_1 = arith.constant 0 : i32
    return %c0_i32, %c0_i32_0 : i32, i32
  }
  func.func @transform_5(%arg0: i32, %arg1: i32) -> (i32, i32, i32) {
    %c0_i32 = arith.constant 0 : i32
    %c0_i32_0 = arith.constant 0 : i32
    %c0_i32_1 = arith.constant 0 : i32
    return %arg0, %c0_i32, %c0_i32_0 : i32, i32, i32
  }
}

</mosaic_0001>

<llo_original>
// kernel: tpu_custom_call.1
$region0: #{tpu_custom_call.1}
  #allocation0 [shape = 'u32[]', space=smem, size = 0x4, offset = 0x4, fixed_abs, tag = 'smem constant byte address 0x4 - core index']
  #allocation1 [shape = 'u32[144,128]{1,0:T(1,128)}', space=vmem, size = 0x12000, scoped, tag = 'internal scratch']
  %s0 = inlined_call_operand.hbm [shape: f32[2,16,144], index: 0, kind: input, shape index: {}]
  %s1 = inlined_call_operand.vmem [shape: f32[16,2], index: 1, kind: input, shape index: {}]
  %s2 = inlined_call_operand.vmem [shape: f32[1,2], index: 2, kind: input, shape index: {}]
  %s3 = inlined_call_operand.vmem [shape: f32[2,16], index: 3, kind: input, shape index: {}]
  %s4 = inlined_call_operand.vmem [shape: f32[1,16], index: 4, kind: input, shape index: {}]
  %s5 = inlined_call_operand.vmem [shape: f32[2,16,1], index: 5, kind: output, shape index: {}]
  %s6 = sld [smem:[#allocation0]]
  $region65: #{tpu_custom_call.1} parent=0
    _
  %s8 = ssub.s32 1, %s6
  %s9 = scalar_select 0, %s8, %s6
  $region1: #{tpu_custom_call.1} parent=0
    #allocation2 [shape = 'u8[16384]{0}', space=vmem, size = 0x4000, scoped, tag = 'input window, operand 0']
    #allocation3 [shape = 's32[2]{0}', space=sflag, size = 0x8, scoped, tag = 'scoped memory for tpu_custom_call.1']
    %10 = vsyncpa [#allocation3], 0
    %s11 = scalar_lea.sflag [#allocation3], 1
    %12 = vsyncpa %s11, 0
    loop: start=0, step=1, limit=6
    $region2: #{tpu_custom_call.1} parent=1 // loop_pre_header
      _
    $region3: #{tpu_custom_call.1} parent=1 // loop_header
      %s14 = sphi 0, %s18
      %p15 = scmp.ge.s32.totalorder %s14, 6
      %s21 = sphi 0, %s33
      %s22 = sphi 0, %s29
      %s23 = sphi 0, %s21
      %s24 = sphi 0, %s22
      %s25 = sphi 0, %s23
      %s26 = sphi 0, %s24
      %s38 = sphi 0, %s40
      %s41 = sphi 0, %s38
      %s42 = sphi 0, %s41
      %s58 = sphi 0, %s42
      %s62 = sphi 0, %s62
      %s64 = sphi 0, %s62
      %s65 = sphi 0, %s64
      %s79 = sphi 0, %s65
      %s83 = sphi 0, %s83
      %s85 = sphi 0, %s83
      %s86 = sphi 0, %s85
      %s100 = sphi 0, %s86
      %s104 = sphi 0, %s104
      %s106 = sphi 0, %s104
      %s107 = sphi 0, %s106
      %s121 = sphi 0, %s107
      %s125 = sphi 0, %s125
      %s127 = sphi 0, %s125
      %s128 = sphi 0, %s127
      %s142 = sphi 0, %s128
      %s148 = sphi 0, %s150
      %s151 = sphi 0, %s148
      %s152 = sphi 0, %s151
      %s168 = sphi 0, %s152
    $region4: #{tpu_custom_call.1} parent=1 // loop_header_branch
      %17 = sbr.rel (%p15) target = $region8
    $region5: #{tpu_custom_call.1} parent=1 // loop_body
      %s19 = ssub.s32 %s14, 1
      %s20 = ssub.s32 %s14, 2
      %s27 = sadd.s32 1, %s22
      %p28 = scmp.ge.s32.totalorder %s27, 2
      %s29 = scalar_select %p28, 0, %s27
      %s30 = sadd.s32 1, %s21
      %s31 = scalar_select %p28, %s30, %s21
      %p32 = scmp.ge.s32.totalorder %s31, 2
      %s33 = scalar_select %p32, 0, %s31
      %s34 = ssub.s32 %s21, %s33
      %s35 = ssub.s32 %s22, %s29
      %s36 = sor.u32 %s34, %s35
      %p37 = scmp.eq.s32.totalorder %s36, 0
      %s39 = sadd.s32 %s38, 1
      %s40 = scalar_select %p37, %s38, %s39
      %p43 = pneg %p37
      %p44 = scmp.eq.s32.totalorder %s14, 3
      %p45 = por %p43, %p44
      %p46 = scmp.ne.s32.totalorder %s38, %s41
      %p47 = scmp.eq.s32.totalorder %s14, 0
      %p48 = por %p46, %p47
      %p49 = scmp.ne.s32.totalorder %s38, %s41
      %p50 = scmp.eq.s32.totalorder %s19, 3
      %p51 = por %p49, %p50
      %p52 = scmp.ne.s32.totalorder %s41, %s42
      %p53 = scmp.eq.s32.totalorder %s19, 0
      %p54 = por %p52, %p53
      %p55 = scmp.ne.s32.totalorder %s41, %s42
      %p56 = scmp.eq.s32.totalorder %s20, 3
      %p57 = por %p55, %p56
      %p59 = scmp.ne.s32.totalorder %s42, %s58
      %p60 = scmp.eq.s32.totalorder %s20, 0
      %p61 = por %p59, %p60
      %s63 = sadd.s32 %s62, 1
      %p66 = scmp.eq.s32.totalorder %s14, 3
      %p67 = scmp.ne.s32.totalorder %s62, %s64
      %p68 = scmp.eq.s32.totalorder %s14, 0
      %p69 = por %p67, %p68
      %p70 = scmp.ne.s32.totalorder %s62, %s64
      %p71 = scmp.eq.s32.totalorder %s19, 3
      %p72 = por %p70, %p71
      %p73 = scmp.ne.s32.totalorder %s64, %s65
      %p74 = scmp.eq.s32.totalorder %s19, 0
      %p75 = por %p73, %p74
      %p76 = scmp.ne.s32.totalorder %s64, %s65
      %p77 = scmp.eq.s32.totalorder %s20, 3
      %p78 = por %p76, %p77
      %p80 = scmp.ne.s32.totalorder %s65, %s79
      %p81 = scmp.eq.s32.totalorder %s20, 0
      %p82 = por %p80, %p81
      %s84 = sadd.s32 %s83, 1
      %p87 = scmp.eq.s32.totalorder %s14, 3
      %p88 = scmp.ne.s32.totalorder %s83, %s85
      %p89 = scmp.eq.s32.totalorder %s14, 0
      %p90 = por %p88, %p89
      %p91 = scmp.ne.s32.totalorder %s83, %s85
      %p92 = scmp.eq.s32.totalorder %s19, 3
      %p93 = por %p91, %p92
      %p94 = scmp.ne.s32.totalorder %s85, %s86
      %p95 = scmp.eq.s32.totalorder %s19, 0
      %p96 = por %p94, %p95
      %p97 = scmp.ne.s32.totalorder %s85, %s86
      %p98 = scmp.eq.s32.totalorder %s20, 3
      %p99 = por %p97, %p98
      %p101 = scmp.ne.s32.totalorder %s86, %s100
      %p102 = scmp.eq.s32.totalorder %s20, 0
      %p103 = por %p101, %p102
      %s105 = sadd.s32 %s104, 1
      %p108 = scmp.eq.s32.totalorder %s14, 3
      %p109 = scmp.ne.s32.totalorder %s104, %s106
      %p110 = scmp.eq.s32.totalorder %s14, 0
      %p111 = por %p109, %p110
      %p112 = scmp.ne.s32.totalorder %s104, %s106
      %p113 = scmp.eq.s32.totalorder %s19, 3
      %p114 = por %p112, %p113
      %p115 = scmp.ne.s32.totalorder %s106, %s107
      %p116 = scmp.eq.s32.totalorder %s19, 0
      %p117 = por %p115, %p116
      %p118 = scmp.ne.s32.totalorder %s106, %s107
      %p119 = scmp.eq.s32.totalorder %s20, 3
      %p120 = por %p118, %p119
      %p122 = scmp.ne.s32.totalorder %s107, %s121
      %p123 = scmp.eq.s32.totalorder %s20, 0
      %p124 = por %p122, %p123
      %s126 = sadd.s32 %s125, 1
      %p129 = scmp.eq.s32.totalorder %s14, 3
      %p130 = scmp.ne.s32.totalorder %s125, %s127
      %p131 = scmp.eq.s32.totalorder %s14, 0
      %p132 = por %p130, %p131
      %p133 = scmp.ne.s32.totalorder %s125, %s127
      %p134 = scmp.eq.s32.totalorder %s19, 3
      %p135 = por %p133, %p134
      %p136 = scmp.ne.s32.totalorder %s127, %s128
      %p137 = scmp.eq.s32.totalorder %s19, 0
      %p138 = por %p136, %p137
      %p139 = scmp.ne.s32.totalorder %s127, %s128
      %p140 = scmp.eq.s32.totalorder %s20, 3
      %p141 = por %p139, %p140
      %p143 = scmp.ne.s32.totalorder %s128, %s142
      %p144 = scmp.eq.s32.totalorder %s20, 0
      %p145 = por %p143, %p144
      %s146 = ssub.s32 %s21, %s33
      %p147 = scmp.eq.s32.totalorder %s146, 0
      %s149 = sadd.s32 %s148, 1
      %s150 = scalar_select %p147, %s148, %s149
      %p153 = pneg %p147
      %p154 = scmp.eq.s32.totalorder %s14, 3
      %p155 = por %p153, %p154
      %p156 = scmp.ne.s32.totalorder %s148, %s151
      %p157 = scmp.eq.s32.totalorder %s14, 0
      %p158 = por %p156, %p157
      %p159 = scmp.ne.s32.totalorder %s148, %s151
      %p160 = scmp.eq.s32.totalorder %s19, 3
      %p161 = por %p159, %p160
      %p162 = scmp.ne.s32.totalorder %s151, %s152
      %p163 = scmp.eq.s32.totalorder %s19, 0
      %p164 = por %p162, %p163
      %p165 = scmp.ne.s32.totalorder %s151, %s152
      %p166 = scmp.eq.s32.totalorder %s20, 3
      %p167 = por %p165, %p166
      %p169 = scmp.ne.s32.totalorder %s152, %s168
      %p170 = scmp.eq.s32.totalorder %s20, 0
      %p171 = por %p169, %p170
      %p172 = scmp.le.s32.totalorder 1, %s14
      %p173 = scmp.lt.s32.totalorder %s14, 5
      %p174 = pnand %p172, %p173
      %p175 = pneg %p174
      // Predicated region
      $region9: #{tpu_custom_call.1} parent=5 // pred_check
        _
      $region10: #{tpu_custom_call.1} parent=5 // pred_check_branch
        %177 = sbr.rel (%p174) target = $region12
      $region11: #{tpu_custom_call.1} parent=5 // pred_region
        %s178 = ssub.s32 %s14, 1
        // Predicated region
        $region13: #{tpu_custom_call.1} parent=11 // pred_check
          %p179 = pneg %p75
        $region14: #{tpu_custom_call.1} parent=11 // pred_check_branch
          %181 = sbr.rel (%p179) target = $region16
        $region15: #{tpu_custom_call.1} parent=11 // pred_region
          _
        $region16: #{tpu_custom_call.1} parent=11 // pred_fallthru
          _
        // Predicated region
        $region17: #{tpu_custom_call.1} parent=11 // pred_check
          %p182 = pneg %p96
        $region18: #{tpu_custom_call.1} parent=11 // pred_check_branch
          %184 = sbr.rel (%p182) target = $region20
        $region19: #{tpu_custom_call.1} parent=11 // pred_region
          _
        $region20: #{tpu_custom_call.1} parent=11 // pred_fallthru
          _
        // Predicated region
        $region21: #{tpu_custom_call.1} parent=11 // pred_check
          %p185 = pneg %p117
        $region22: #{tpu_custom_call.1} parent=11 // pred_check_branch
          %187 = sbr.rel (%p185) target = $region24
        $region23: #{tpu_custom_call.1} parent=11 // pred_region
          _
        $region24: #{tpu_custom_call.1} parent=11 // pred_fallthru
          _
        // Predicated region
        $region25: #{tpu_custom_call.1} parent=11 // pred_check
          %p188 = pneg %p138
        $region26: #{tpu_custom_call.1} parent=11 // pred_check_branch
          %190 = sbr.rel (%p188) target = $region28
        $region27: #{tpu_custom_call.1} parent=11 // pred_region
          _
        $region28: #{tpu_custom_call.1} parent=11 // pred_fallthru
          _
      $region12: #{tpu_custom_call.1} parent=5 // pred_fallthru
        _
      %p191 = scmp.lt.s32.totalorder %s14, 4
      // Predicated region
      $region29: #{tpu_custom_call.1} parent=5 // pred_check
        %p192 = pneg %p191
      $region30: #{tpu_custom_call.1} parent=5 // pred_check_branch
        %194 = sbr.rel (%p192) target = $region32
      $region31: #{tpu_custom_call.1} parent=5 // pred_region
        // Predicated region
        $region33: #{tpu_custom_call.1} parent=31 // pred_check
          %p195 = pneg %p48
        $region34: #{tpu_custom_call.1} parent=31 // pred_check_branch
          %197 = sbr.rel (%p195) target = $region36
        $region35: #{tpu_custom_call.1} parent=31 // pred_region
          %s198 = sand.u32 %s38, 1
          %s199 = scalar_lea.sflag [#allocation3], %s198
          %s200 = sand.u32 %s38, 1
          %s201 = smul.addr %s200, 16
          %s202 = scalar_lea.vmem [#allocation2], %s201
          %s204 = ssub.s32 256, 256
          %205 = vsyncadd %s199, %s204
          %s206 = smul.addr %s21, 4
          %s207 = sadd.s32 %s22, %s206
          %s208 = smul.addr %s207, 128
          %s209 = scalar_lea.hbm %s0, %s208
          %s210 = sshll.u32 %s202, 4
          %s211 = int_to_ptr.vmem [resolvable:$true] %s210
          %216 = dma.hbm_to_vmem [thread:$0]  %s209, 256, %s211, %s199, 256, 128, 8
        $region36: #{tpu_custom_call.1} parent=31 // pred_fallthru
          _
      $region32: #{tpu_custom_call.1} parent=5 // pred_fallthru
        _
      %p217 = scmp.le.s32.totalorder 1, %s14
      %p218 = scmp.lt.s32.totalorder %s14, 5
      %p219 = pnand %p217, %p218
      %p220 = pneg %p219
      // Predicated region
      $region37: #{tpu_custom_call.1} parent=5 // pred_check
        _
      $region38: #{tpu_custom_call.1} parent=5 // pred_check_branch
        %222 = sbr.rel (%p219) target = $region40
      $region39: #{tpu_custom_call.1} parent=5 // pred_region
        %s223 = ssub.s32 %s14, 1
        %s224 = sand.u32 %s41, 1
        %s225 = scalar_lea.sflag [#allocation3], %s224
        %s226 = sand.u32 %s41, 1
        %s227 = smul.addr %s226, 16
        %s228 = scalar_lea.vmem [#allocation2], %s227
        // Predicated region
        $region41: #{tpu_custom_call.1} parent=39 // pred_check
          %p229 = pneg %p54
        $region42: #{tpu_custom_call.1} parent=39 // pred_check_branch
          %231 = sbr.rel (%p229) target = $region44
        $region43: #{tpu_custom_call.1} parent=39 // pred_region
          %232 = dma.done %s225, 256
        $region44: #{tpu_custom_call.1} parent=39 // pred_fallthru
          _
        %s233 = sand.u32 %s41, 1
        %s234 = scalar_lea.sflag [#allocation3], %s233
        %s235 = sand.u32 %s41, 1
        %s236 = smul.addr %s235, 16
        %s237 = scalar_lea.vmem [#allocation2], %s236
        %p238 = pneg %p54
        %p239 = pneg %p51
        %p240 = pneg %p75
        %p241 = pneg %p72
        %p242 = pneg %p96
        %p243 = pneg %p93
        %p244 = pneg %p117
        %p245 = pneg %p114
        %p246 = pneg %p138
        %p247 = pneg %p135
        %p248 = pneg %p164
        %p249 = pneg %p161
        %p250 = scmp.lt.s32.totalorder %s23, 1
        %s251 = scalar_select %p250, %s23, 1
        %s252 = smul.addr %s251, 2
        %s253 = smul.addr %s252, 8
        %s254 = scalar_lea.vmem %s5, %s253
        %p255 = scmp.lt.s32.totalorder %s23, 1
        %s256 = scalar_select %p255, %s23, 1
        %s257 = smul.addr %s256, 2
        %s258 = smul.addr %s257, 8
        %s259 = scalar_lea.vmem %s5, %s258
        %p260 = scmp.eq.s32.totalorder %s24, 0
        // Predicated region
        $region45: #{tpu_custom_call.1} parent=39 // pred_check
          %p261 = pneg %p260
        $region46: #{tpu_custom_call.1} parent=39 // pred_check_branch
          %263 = sbr.rel (%p261) target = $region48
        $region47: #{tpu_custom_call.1} parent=39 // pred_region
          %vm264 = vcmask 7168
          %265 = vst.msk [vmem:[%s259] sm:$0xff] %vm264, 0.0
          %266 = vst.msk [vmem:[%s259 + $0x8] sm:$0xff] %vm264, 0.0
        $region48: #{tpu_custom_call.1} parent=39 // pred_fallthru
          _
        %v267 = vld [vmem:[%s228] sm:$0xff]
        %v268 = vld [vmem:[%s228 + $0x8] sm:$0xff]
        %v269 = vlaneseq
        %v270 = vand.u32 %v269, 127
        %p271 = scmp.eq.s32.totalorder %s24, 1
        %s272 = scalar_select %p271, 16, 128
        %v273 = vstv %s272
        %vm274 = vcmp.lt.s32.totalorder %v270, %v273
        %v275 = vsel %vm274, 1, 0
        %vm276 = vcmp.eq.s32.totalorder %v275, 1
        %v277 = vsel %vm276, %v267, 0.0
        %v278 = vsel %vm276, %v268, 0.0
        %v279 = vld [vmem:[%s259] sm:$0xff]
        %v280 = vld [vmem:[%s259 + $0x8] sm:$0xff]
        %281 = vadd.xlane.f32.xlu0 %v277
        %v282 = vpop.xlane.xlu0 %281
        %283 = vadd.xlane.f32.xlu0 %v278
        %v284 = vpop.xlane.xlu0 %283
        %v285 = vadd.f32 %v279, %v282
        %v286 = vadd.f32 %v280, %v284
        %vm287 = vcmask 7168
        %288 = vst.msk [vmem:[%s259] sm:$0xff] %vm287, %v285
        %289 = vst.msk [vmem:[%s259 + $0x8] sm:$0xff] %vm287, %v286
        // Predicated region
        $region49: #{tpu_custom_call.1} parent=39 // pred_check
          %p290 = pneg %p271
        $region50: #{tpu_custom_call.1} parent=39 // pred_check_branch
          %292 = sbr.rel (%p290) target = $region52
        $region51: #{tpu_custom_call.1} parent=39 // pred_region
          %v293 = vld [vmem:[%s259] sm:$0xff]
          %v294 = vld [vmem:[%s259 + $0x8] sm:$0xff]
          %v295 = vmul.f32 %v293, 0.0069444445
          %v296 = vmul.f32 %v294, 0.0069444445
          %v297 = vld [vmem:[%s1] sm:$0xff]
          %v298 = vld [vmem:[%s1 + $0x8] sm:$0xff]
          %v299 = vld [vmem:[%s2] sm:$0x1]
          %302 = vset.pattern.permute.xlu0 0
          %303 = vperm.xlu0 %302, %v295
          %v304 = vpop.permute.xlu0 %303
          %305 = vset.pattern.permute.xlu0 0
          %306 = vperm.xlu0 %305, %v296
          %v307 = vpop.permute.xlu0 %306
          %v308 = vlaneseq
          %v309 = vshrl.u32 %v308, 7
          %v310 = vsub.s32 %v270, %v309
          %v311 = vrot.slane %v304, %v310
          %v312 = vadd.s32 %v270, 4294967288
          %v313 = vlaneseq
          %v314 = vshrl.u32 %v313, 7
          %v315 = vsub.s32 %v312, %v314
          %v316 = vrot.slane %v307, %v315
          %vm317 = vcmask 130112
          %v318 = vsel %vm317, %v316, %v311
          %vm319 = vcmask 130048
          %v320 = vsel %vm319, %v318, 0
          %322 = vmatprep.subr.mxu0 0.0
          %323 = vmatpush1.msra.mxu0 0.0
          %324 = vmatprep.subr.mxu0 0.0
          %325 = vmatpush1.msra.mxu0 0.0
          %326 = vmatprep.subr.mxu0 0.0
          %327 = vmatpush1.msra.mxu0 0.0
          %328 = vmatprep.subr.mxu0 0.0
          %329 = vmatpush1.msra.mxu0 0.0
          %330 = vmatprep.subr.mxu0 0.0
          %331 = vmatpush1.msra.mxu0 0.0
          %332 = vmatprep.subr.mxu0 0.0
          %333 = vmatpush1.msra.mxu0 0.0
          %334 = vmatprep.subr.mxu0 0.0
          %335 = vmatpush1.msra.mxu0 0.0
          %336 = vmatprep.subr.mxu0 0.0
          %337 = vmatpush1.msra.mxu0 0.0
          %338 = vmatprep.subr.mxu0 0.0
          %339 = vmatpush1.msra.mxu0 0.0
          %340 = vmatprep.subr.mxu0 0.0
          %341 = vmatpush1.msra.mxu0 0.0
          %342 = vmatprep.subr.mxu0 0.0
          %343 = vmatpush1.msra.mxu0 0.0
          %344 = vmatprep.subr.mxu0 0.0
          %345 = vmatpush1.msra.mxu0 0.0
          %346 = vmatprep.subr.mxu0 0.0
          %347 = vmatpush1.msra.mxu0 0.0
          %348 = vmatprep.subr.mxu0 0.0
          %349 = vmatpush1.msra.mxu0 0.0
          %350 = vmatprep.subr.mxu0 0.0
          %351 = vmatpush1.msra.mxu0 %v298
          %352 = vmatprep.subr.mxu0 0.0
          %353 = vmatpush1.msra.mxu0 %v297
          %354 = vmatprep.subr.mxu0 0.0
          %355 = vmatpush2.msra.mxu0 0.0
          %356 = vmatprep.subr.mxu0 0.0
          %357 = vmatpush2.msra.mxu0 0.0
          %358 = vmatprep.subr.mxu0 0.0
          %359 = vmatpush2.msra.mxu0 0.0
          %360 = vmatprep.subr.mxu0 0.0
          %361 = vmatpush2.msra.mxu0 0.0
          %362 = vmatprep.subr.mxu0 0.0
          %363 = vmatpush2.msra.mxu0 0.0
          %364 = vmatprep.subr.mxu0 0.0
          %365 = vmatpush2.msra.mxu0 0.0
          %366 = vmatprep.subr.mxu0 0.0
          %367 = vmatpush2.msra.mxu0 0.0
          %368 = vmatprep.subr.mxu0 0.0
          %369 = vmatpush2.msra.mxu0 0.0
          %370 = vmatprep.subr.mxu0 0.0
          %371 = vmatpush2.msra.mxu0 0.0
          %372 = vmatprep.subr.mxu0 0.0
          %373 = vmatpush2.msra.mxu0 0.0
          %374 = vmatprep.subr.mxu0 0.0
          %375 = vmatpush2.msra.mxu0 0.0
          %376 = vmatprep.subr.mxu0 0.0
          %377 = vmatpush2.msra.mxu0 0.0
          %378 = vmatprep.subr.mxu0 0.0
          %379 = vmatpush2.msra.mxu0 0.0
          %380 = vmatprep.subr.mxu0 0.0
          %381 = vmatpush2.msra.mxu0 0.0
          %382 = vmatprep.subr.mxu0 0.0
          %383 = vmatpush2.msra.mxu0 0.0
          %384 = vmatprep.subr.mxu0 0.0
          %385 = vmatpush2.msra.mxu0 0.0
          %386 = vmatprep.mubr.f32.mxu0 0.0
          %387 = vmatmul.mubr.f32.gmra.mxu0 %v320
          %v388 = vpop.f32.mrf.mxu0
          %v389 = vadd.f32 %v299, %v388
          %v390 = vpop.f32.mrf.mxu0
          %391 = vdwg.mxu0
          %v392 = vmax.f32 %v389, 0.0
          %v393 = vld [vmem:[%s3] sm:$0x3]
          %v394 = vld [vmem:[%s4] sm:$0x1]
          %vm395 = vcmask 15360
          %v397 = vsel %vm395, %v392, 0
          %vm399 = vcmask 1041408
          %v401 = vsel %vm399, %v393, 0
          %403 = vmatprep.subr.mxu0 0.0
          %404 = vmatpush1.msra.mxu0 0.0
          %405 = vmatprep.subr.mxu0 0.0
          %406 = vmatpush1.msra.mxu0 0.0
          %407 = vmatprep.subr.mxu0 0.0
          %408 = vmatpush1.msra.mxu0 0.0
          %409 = vmatprep.subr.mxu0 0.0
          %410 = vmatpush1.msra.mxu0 0.0
          %411 = vmatprep.subr.mxu0 0.0
          %412 = vmatpush1.msra.mxu0 0.0
          %413 = vmatprep.subr.mxu0 0.0
          %414 = vmatpush1.msra.mxu0 0.0
          %415 = vmatprep.subr.mxu0 0.0
          %416 = vmatpush1.msra.mxu0 0.0
          %417 = vmatprep.subr.mxu0 0.0
          %418 = vmatpush1.msra.mxu0 0.0
          %419 = vmatprep.subr.mxu0 0.0
          %420 = vmatpush1.msra.mxu0 0.0
          %421 = vmatprep.subr.mxu0 0.0
          %422 = vmatpush1.msra.mxu0 0.0
          %423 = vmatprep.subr.mxu0 0.0
          %424 = vmatpush1.msra.mxu0 0.0
          %425 = vmatprep.subr.mxu0 0.0
          %426 = vmatpush1.msra.mxu0 0.0
          %427 = vmatprep.subr.mxu0 0.0
          %428 = vmatpush1.msra.mxu0 0.0
          %429 = vmatprep.subr.mxu0 0.0
          %430 = vmatpush1.msra.mxu0 0.0
          %431 = vmatprep.subr.mxu0 0.0
          %432 = vmatpush1.msra.mxu0 0.0
          %433 = vmatprep.subr.mxu0 0.0
          %434 = vmatpush1.msra.mxu0 %v401
          %435 = vmatprep.subr.mxu0 0.0
          %436 = vmatpush2.msra.mxu0 0.0
          %437 = vmatprep.subr.mxu0 0.0
          %438 = vmatpush2.msra.mxu0 0.0
          %439 = vmatprep.subr.mxu0 0.0
          %440 = vmatpush2.msra.mxu0 0.0
          %441 = vmatprep.subr.mxu0 0.0
          %442 = vmatpush2.msra.mxu0 0.0
          %443 = vmatprep.subr.mxu0 0.0
          %444 = vmatpush2.msra.mxu0 0.0
          %445 = vmatprep.subr.mxu0 0.0
          %446 = vmatpush2.msra.mxu0 0.0
          %447 = vmatprep.subr.mxu0 0.0
          %448 = vmatpush2.msra.mxu0 0.0
          %449 = vmatprep.subr.mxu0 0.0
          %450 = vmatpush2.msra.mxu0 0.0
          %451 = vmatprep.subr.mxu0 0.0
          %452 = vmatpush2.msra.mxu0 0.0
          %453 = vmatprep.subr.mxu0 0.0
          %454 = vmatpush2.msra.mxu0 0.0
          %455 = vmatprep.subr.mxu0 0.0
          %456 = vmatpush2.msra.mxu0 0.0
          %457 = vmatprep.subr.mxu0 0.0
          %458 = vmatpush2.msra.mxu0 0.0
          %459 = vmatprep.subr.mxu0 0.0
          %460 = vmatpush2.msra.mxu0 0.0
          %461 = vmatprep.subr.mxu0 0.0
          %462 = vmatpush2.msra.mxu0 0.0
          %463 = vmatprep.subr.mxu0 0.0
          %464 = vmatpush2.msra.mxu0 0.0
          %465 = vmatprep.subr.mxu0 0.0
          %466 = vmatpush2.msra.mxu0 0.0
          %467 = vmatprep.mubr.f32.mxu0 0.0
          %468 = vmatmul.mubr.f32.gmra.mxu0 %v397
          %v469 = vpop.f32.mrf.mxu0
          %v470 = vadd.f32 %v394, %v469
          %v471 = vpop.f32.mrf.mxu0
          %472 = vdwg.mxu0
          %v473 = vlaneseq
          %v474 = vshrl.u32 %v473, 7
          %v475 = vsub.s32 0, %v474
          %v476 = vrot.slane %v470, %v475
          %478 = vbcast.lane.b32.xlu0 %v476, 256
          %v479 = vpop.permute.xlu0 %478
          %s481 = sor.u32 256, 8
          %482 = vbcast.lane.b32.xlu0 %v476, %s481
          %v483 = vpop.permute.xlu0 %482
          %484 = vst.msk [vmem:[%s259] sm:$0xff] %vm287, %v479
          %485 = vst.msk [vmem:[%s259 + $0x8] sm:$0xff] %vm287, %v483
        $region52: #{tpu_custom_call.1} parent=39 // pred_fallthru
          _
        %p486 = scmp.lt.s32.totalorder %s23, 1
        %s487 = scalar_select %p486, %s23, 1
        %s488 = smul.addr %s487, 2
        %s489 = smul.addr %s488, 8
        %s490 = scalar_lea.vmem %s5, %s489
        // Predicated region
        $region53: #{tpu_custom_call.1} parent=39 // pred_check
          %p491 = pneg %p161
        $region54: #{tpu_custom_call.1} parent=39 // pred_check_branch
          %493 = sbr.rel (%p491) target = $region56
        $region55: #{tpu_custom_call.1} parent=39 // pred_region
          _
        $region56: #{tpu_custom_call.1} parent=39 // pred_fallthru
          _
      $region40: #{tpu_custom_call.1} parent=5 // pred_fallthru
        _
      %p494 = scmp.le.s32.totalorder 2, %s14
      // Predicated region
      $region57: #{tpu_custom_call.1} parent=5 // pred_check
        %p495 = pneg %p494
      $region58: #{tpu_custom_call.1} parent=5 // pred_check_branch
        %497 = sbr.rel (%p495) target = $region60
      $region59: #{tpu_custom_call.1} parent=5 // pred_region
        %s498 = ssub.s32 %s14, 2
        // Predicated region
        $region61: #{tpu_custom_call.1} parent=59 // pred_check
          %p499 = pneg %p167
        $region62: #{tpu_custom_call.1} parent=59 // pred_check_branch
          %501 = sbr.rel (%p499) target = $region64
        $region63: #{tpu_custom_call.1} parent=59 // pred_region
          %p502 = scmp.lt.s32.totalorder %s25, 1
          %s503 = scalar_select %p502, %s25, 1
          %s504 = smul.addr %s503, 2
          %s505 = smul.addr %s504, 8
          %s506 = scalar_lea.vmem %s5, %s505
        $region64: #{tpu_custom_call.1} parent=59 // pred_fallthru
          _
      $region60: #{tpu_custom_call.1} parent=5 // pred_fallthru
        _
    $region6: #{tpu_custom_call.1} parent=1 // loop_footer
      %s18 = sadd.s32 1, %s14
    $region7: #{tpu_custom_call.1} parent=1 // loop_footer_branch
      %13 = sbr.rel target = $region3
    $region8: #{tpu_custom_call.1} parent=1 // loop_exit
      _
    %507 = vsyncpa [#allocation3], 1
    %s508 = scalar_lea.sflag [#allocation3], 1
    %509 = vsyncpa %s508, 1

</llo_original>
